<compile_context>
chip_gen: v6e
topology: v6e:2x2x1
jax: 0.10.0
libtpu: 0.0.40
codegen_flags: <defaults>
</compile_context>

<pallas_src>
import functools

import jax
import jax.numpy as jnp
from jax.experimental import pallas as pl
from jax.experimental.pallas import tpu as pltpu


def _cross_entropy_kernel(x_ref, y_ref, out_ref, *, tb, batch_size):
    # x_ref: (tb, C) logits (native dtype), y_ref: (tb, 1) i32 labels,
    # out_ref: (1, 1, 1) f32 per-block partial sum of NLL.
    x = x_ref[...].astype(jnp.float32)                            # (tb, C)
    y = y_ref[...]                                                # (tb, 1)

    # Numerically-stable log-sum-exp; s = x - m is reused for the picked logit.
    m = jnp.max(x, axis=-1, keepdims=True)                        # (tb, 1)
    s = x - m                                                     # (tb, C)
    sum_exp = jnp.sum(jnp.exp(s), axis=-1, keepdims=True)         # (tb, 1)

    # Picked (shifted) logit s[i, y_i] via one-hot mask + lane reduction.
    col_ids = jax.lax.broadcasted_iota(jnp.int32, x.shape, 1)     # (tb, C)
    s_picked = jnp.sum(jnp.where(col_ids == y, s, 0.0),
                       axis=-1, keepdims=True)                    # (tb, 1)

    # nll = (m + log(sum_exp)) - (m + s_picked) = log(sum_exp) - s_picked
    nll = jnp.log(sum_exp) - s_picked                             # (tb, 1)

    # Mask rows past the true batch size (padding) and emit one partial sum.
    row_ids = (pl.program_id(0) * tb
               + jax.lax.broadcasted_iota(jnp.int32, (tb, 1), 0))
    nll = jnp.where(row_ids < batch_size, nll, 0.0)
    out_ref[...] = jnp.sum(nll, axis=0, keepdims=True).reshape(1, 1, 1)


def cross_entropy(x: jax.Array, y: jax.Array, *, block_rows: int | None = None) -> jax.Array:
    """Mean cross-entropy loss matching the PyTorch CrossEntropy module."""
    B, C = x.shape
    y2 = y.reshape(B, 1).astype(jnp.int32)

    itemsize = jnp.dtype(x.dtype).itemsize
    # Sublane packing multiple: 8 rows (f32), 16 (bf16/f16), 32 (int8/fp8).
    row_align = 8 if itemsize >= 4 else (16 if itemsize == 2 else 32)
    b_ceil = -(-B // row_align) * row_align

    if block_rows is None:
        # ~3 MiB of f32-equivalent logits per tile. Working set per review:
        # 2 x native tile (double-buffered DMA) + ~4 x f32 tile (temporaries)
        # => <~20 MiB, comfortably under the 48 MiB limit requested below.
        target_f32_elems = (3 * 1024 * 1024) // 4
        block_rows = max(row_align, target_f32_elems // C)
    tb = min(block_rows, b_ceil)
    tb = max(row_align, (tb // row_align) * row_align)

    num_blocks = -(-B // tb)
    b_pad = num_blocks * tb
    if b_pad != B:
        x = jnp.pad(x, ((0, b_pad - B), (0, 0)))
        y2 = jnp.pad(y2, ((0, b_pad - B), (0, 0)))

    kernel = functools.partial(_cross_entropy_kernel, tb=tb, batch_size=B)

    partial_sums = pl.pallas_call(
        kernel,
        out_shape=jax.ShapeDtypeStruct((num_blocks, 1, 1), jnp.float32),
        grid_spec=pltpu.PrefetchScalarGridSpec(
            num_scalar_prefetch=0,
            grid=(num_blocks,),
            in_specs=[
                pl.BlockSpec((tb, C), lambda i: (i, 0)),
                pl.BlockSpec((tb, 1), lambda i: (i, 0)),
            ],
            out_specs=pl.BlockSpec((1, 1, 1), lambda i: (i, 0, 0)),
        ),
        compiler_params=pltpu.CompilerParams(
            dimension_semantics=("parallel",),
            # Explicit scoped-VMEM budget: > v5e (16 MiB) / v6e-v7x (32 MiB)
            # defaults, <= v7x's 64 MiB per-TC physical with headroom.
            vmem_limit_bytes=48 * 1024 * 1024,
        ),
    )(x, y2)

    # Only num_blocks scalars remain; divide by the *true* batch size.
    return jnp.sum(partial_sums) / jnp.float32(B)


def _reference(x, y):
    b = x.shape[0]
    xf = x.astype(jnp.float32)
    return -jnp.sum(jax.nn.log_softmax(xf, axis=-1)[jnp.arange(b), y]) / b


if __name__ == "__main__":
    key = jax.random.PRNGKey(0)
    k1, k2, k3, k4, k5, k6 = jax.random.split(key, 6)

    # Case 1: small shape matching the module's 2-D logits input.
    B, C = 8, 128
    x = jax.random.normal(k1, (B, C), dtype=jnp.float32)
    y = jax.random.randint(k2, (B,), 0, C, dtype=jnp.int32)
    loss = jax.block_until_ready(cross_entropy(x, y))
    ref = _reference(x, y)
    assert jnp.allclose(loss, ref, atol=1e-5, rtol=1e-5), (loss, ref)

    # Case 2: exercises the batch grid + ragged-batch in-kernel masking path.
    B2, C2 = 20, 256
    x2 = jax.random.normal(k3, (B2, C2), dtype=jnp.float32)
    y2 = jax.random.randint(k4, (B2,), 0, C2, dtype=jnp.int32)
    loss2 = jax.block_until_ready(cross_entropy(x2, y2, block_rows=8))
    ref2 = _reference(x2, y2)
    assert jnp.allclose(loss2, ref2, atol=1e-5, rtol=1e-5), (loss2, ref2)

    # Case 3: bf16 logits (halved HBM traffic, 16-row sublane alignment).
    B3, C3 = 40, 512
    x3 = jax.random.normal(k5, (B3, C3), dtype=jnp.float32).astype(jnp.bfloat16)
    y3 = jax.random.randint(k6, (B3,), 0, C3, dtype=jnp.int32)
    loss3 = jax.block_until_ready(cross_entropy(x3, y3))
    ref3 = _reference(x3, y3)
    assert jnp.allclose(loss3, ref3, atol=1e-5, rtol=1e-4), (loss3, ref3)

    print("KERNEL_OK")
</pallas_src>

<mosaic_0001>
module attributes {stable_mosaic.version = 11 : i64} {
  func.func @_cross_entropy_kernel(%arg0: i32, %arg1: memref<8x128xf32, #tpu.memory_space<vmem>>, %arg2: memref<8x1xi32, #tpu.memory_space<vmem>>, %arg3: memref<1x1x1xf32, #tpu.memory_space<vmem>>) attributes {dimension_semantics = [#tpu.dimension_semantics<parallel>], iteration_bounds = array<i64: 1>, scalar_prefetch = 0 : i64, scratch_operands = 0 : i64, tpu.core_type = #tpu.core_type<tc>, window_params = [{transform_indices = @transform_0, window_bounds = array<i64: 8, 128>}, {transform_indices = @transform_1, window_bounds = array<i64: 8, 1>}, {transform_indices = @transform_2, window_bounds = array<i64: 1, 1, 1>}]} {
    %c0 = arith.constant 0 : index
    %c0_0 = arith.constant 0 : index
    %0 = vector.load %arg1[%c0, %c0_0] : memref<8x128xf32, #tpu.memory_space<vmem>>, vector<8x128xf32>
    %c0_1 = arith.constant 0 : index
    %c0_2 = arith.constant 0 : index
    %1 = vector.load %arg2[%c0_1, %c0_2] : memref<8x1xi32, #tpu.memory_space<vmem>>, vector<8x1xi32>
    %cst = arith.constant dense<0xFF800000> : vector<8xf32>
    %2 = vector.multi_reduction <maximumf>, %0, %cst [1] : vector<8x128xf32> to vector<8xf32>
    %3 = vector.shape_cast %2 : vector<8xf32> to vector<8x1xf32>
    %4 = vector.broadcast %3 : vector<8x1xf32> to vector<8x128xf32>
    %5 = arith.subf %0, %4 : vector<8x128xf32>
    %6 = math.exp %5 : vector<8x128xf32>
    %cst_3 = arith.constant dense<0.000000e+00> : vector<8xf32>
    %7 = vector.multi_reduction <add>, %6, %cst_3 [1] : vector<8x128xf32> to vector<8xf32>
    %8 = vector.shape_cast %7 : vector<8xf32> to vector<8x1xf32>
    %9 = tpu.iota {dimensions = array<i32: 1>} : vector<8x128xi32>
    %10 = vector.broadcast %1 : vector<8x1xi32> to vector<8x128xi32>
    %11 = arith.cmpi eq, %9, %10 : vector<8x128xi32>
    %cst_4 = arith.constant 0.000000e+00 : f32
    %12 = vector.broadcast %cst_4 : f32 to vector<8x128xf32>
    %13 = arith.select %11, %5, %12 : vector<8x128xi1>, vector<8x128xf32>
    %cst_5 = arith.constant dense<0.000000e+00> : vector<8xf32>
    %14 = vector.multi_reduction <add>, %13, %cst_5 [1] : vector<8x128xf32> to vector<8xf32>
    %15 = vector.shape_cast %14 : vector<8xf32> to vector<8x1xf32>
    %16 = math.log %8 : vector<8x1xf32>
    %17 = arith.subf %16, %15 : vector<8x1xf32>
    %c8_i32 = arith.constant 8 : i32
    %18 = arith.muli %arg0, %c8_i32 : i32
    %19 = tpu.iota {dimensions = array<i32: 0>} : vector<8x1xi32>
    %20 = vector.broadcast %18 : i32 to vector<8x1xi32>
    %21 = arith.addi %20, %19 : vector<8x1xi32>
    %c8_i32_6 = arith.constant 8 : i32
    %22 = vector.broadcast %c8_i32_6 : i32 to vector<8x1xi32>
    %23 = arith.cmpi slt, %21, %22 : vector<8x1xi32>
    %cst_7 = arith.constant 0.000000e+00 : f32
    %24 = vector.broadcast %cst_7 : f32 to vector<8x1xf32>
    %25 = arith.select %23, %17, %24 : vector<8x1xi1>, vector<8x1xf32>
    %cst_8 = arith.constant dense<0.000000e+00> : vector<1xf32>
    %26 = vector.multi_reduction <add>, %25, %cst_8 [0] : vector<8x1xf32> to vector<1xf32>
    %27 = vector.shape_cast %26 : vector<1xf32> to vector<1x1xf32>
    %28 = vector.shape_cast %27 : vector<1x1xf32> to vector<1x1x1xf32>
    %c0_9 = arith.constant 0 : index
    %c0_10 = arith.constant 0 : index
    %c0_11 = arith.constant 0 : index
    %29 = vector.load %arg3[%c0_9, %c0_10, %c0_11] : memref<1x1x1xf32, #tpu.memory_space<vmem>>, vector<1x1x1xf32>
    tpu.vector_store %arg3[%c0_9, %c0_10, %c0_11], %28 {strides = array<i32>} : memref<1x1x1xf32, #tpu.memory_space<vmem>>, vector<1x1x1xf32>,
    return
  }
  func.func @transform_0(%arg0: i32) -> (i32, i32) {
    %c0_i32 = arith.constant 0 : i32
    %c0_i32_0 = arith.constant 0 : i32
    return %arg0, %c0_i32 : i32, i32
  }
  func.func @transform_1(%arg0: i32) -> (i32, i32) {
    %c0_i32 = arith.constant 0 : i32
    %c0_i32_0 = arith.constant 0 : i32
    return %arg0, %c0_i32 : i32, i32
  }
  func.func @transform_2(%arg0: i32) -> (i32, i32, i32) {
    %c0_i32 = arith.constant 0 : i32
    %c0_i32_0 = arith.constant 0 : i32
    %c0_i32_1 = arith.constant 0 : i32
    return %arg0, %c0_i32, %c0_i32_0 : i32, i32, i32
  }
}

</mosaic_0001>

<llo_original>
// kernel: tpu_custom_call.1
$region0: #{tpu_custom_call.1}
  #allocation0 [shape = 'u32[]', space=smem, size = 0x4, offset = 0x4, fixed_abs, tag = 'smem constant byte address 0x4 - core index']
  #allocation1 [shape = 'u32[144,128]{1,0:T(1,128)}', space=vmem, size = 0x12000, scoped, tag = 'internal scratch']
  %s0 = inlined_call_operand.vmem [shape: f32[8,128], index: 0, kind: input, shape index: {}]
  %s1 = inlined_call_operand.vmem [shape: s32[8,1], index: 1, kind: input, shape index: {}]
  %s2 = inlined_call_operand.hbm [shape: f32[1,1,1], index: 2, kind: output, shape index: {}]
  %s3 = sld [smem:[#allocation0]]
  $region18: #{tpu_custom_call.1} parent=0
    _
  %s5 = ssub.s32 1, %s3
  %s6 = scalar_select 0, %s5, %s3
  $region1: #{tpu_custom_call.1} parent=0
    #allocation2 [shape = 'u8[512]{0}', space=vmem, size = 0x400, scoped, tag = 'output window, operand 0, single buffered']
    #allocation3 [shape = 's32[1]{0}', space=sflag, size = 0x4, scoped, tag = 'scoped memory for tpu_custom_call.1']
    %7 = vsyncpa [#allocation3], 0
    // Predicated region
    $region2: #{tpu_custom_call.1} parent=1 // pred_check
      _
    $region3: #{tpu_custom_call.1} parent=1 // pred_check_branch
      %9 = sbr.rel (0) target = $region5
    $region4: #{tpu_custom_call.1} parent=1 // pred_region
      _
    $region5: #{tpu_custom_call.1} parent=1 // pred_fallthru
      _
    // Predicated region
    $region6: #{tpu_custom_call.1} parent=1 // pred_check
      _
    $region7: #{tpu_custom_call.1} parent=1 // pred_check_branch
      %11 = sbr.rel (0) target = $region9
    $region8: #{tpu_custom_call.1} parent=1 // pred_region
      _
    $region9: #{tpu_custom_call.1} parent=1 // pred_fallthru
      _
    %v12 = vld [vmem:[%s0] sm:$0xff]
    %v13 = vld [vmem:[%s1] sm:$0xff]
    %14 = vmax.xlane.f32.xlu0 %v12
    %v15 = vpop.xlane.xlu0 %14
    %v16 = vsub.f32 %v12, %v15
    %v17 = vmul.f32 %v16, 1.442695
    %v18 = vpow.pop %v17
    %19 = vadd.xlane.f32.xlu0 %v18
    %v20 = vpop.xlane.xlu0 %19
    %v21 = vlaneseq
    %v22 = vand.u32 %v21, 127
    %23 = vset.pattern.permute.xlu0 0
    %24 = vperm.xlu0 %23, %v13
    %v25 = vpop.permute.xlu0 %24
    %vm26 = vcmp.eq.s32.totalorder %v22, %v25
    %v27 = vsel %vm26, %v16, 0.0
    %28 = vadd.xlane.f32.xlu0 %v27
    %v29 = vpop.xlane.xlu0 %28
    %v30 = vlog2.pop %v20
    %v31 = vmul.f32 %v30, 0.6931472
    %v32 = vsub.f32 %v31, %v29
    %s33 = smul.u32 0, 8
    %v34 = vlaneseq
    %v35 = vshrl.u32 %v34, 7
    %v36 = vstv %s33
    %v37 = vadd.s32 %v36, %v35
    %vm38 = vcmp.lt.s32.totalorder %v37, 8
    %v39 = vsel %vm38, %v32, 0.0
    %v40 = vrot.slane %v39, 4
    %v41 = vadd.f32 %v39, %v40
    %v42 = vrot.slane %v41, 2
    %v43 = vadd.f32 %v41, %v42
    %v44 = vrot.slane %v43, 1
    %v45 = vadd.f32 %v43, %v44
    %vm46 = vcmask 0
    %47 = vst.msk [vmem:[#allocation2] sm:$0x1] %vm46, %v45
    // Predicated region
    $region10: #{tpu_custom_call.1} parent=1 // pred_check
      _
    $region11: #{tpu_custom_call.1} parent=1 // pred_check_branch
      %49 = sbr.rel (0) target = $region13
    $region12: #{tpu_custom_call.1} parent=1 // pred_region
      %s51 = ssub.s32 16, 16
      %52 = vsyncadd [#allocation3], %s51
      %s54 = sshll.u32 [#allocation2], 4
      %s55 = int_to_ptr.vmem [resolvable:$true] %s54
      %57 = dma.vmem_to_hbm [thread:$0]  %s55, 16, %s2, [#allocation3]
    $region13: #{tpu_custom_call.1} parent=1 // pred_fallthru
      _
    // Predicated region
    $region14: #{tpu_custom_call.1} parent=1 // pred_check
      _
    $region15: #{tpu_custom_call.1} parent=1 // pred_check_branch
      %59 = sbr.rel (0) target = $region17
    $region16: #{tpu_custom_call.1} parent=1 // pred_region
      %60 = dma.done [#allocation3], 16
    $region17: #{tpu_custom_call.1} parent=1 // pred_fallthru
      _
    %61 = vsyncpa [#allocation3], 1

</llo_original>
